<compile_context>
chip_gen: v5e
topology: v5e:2x2
jax: 0.10.0
libtpu: 0.0.40
codegen_flags: <defaults>
</compile_context>

<pallas_src>
import jax
import jax.numpy as jnp
from jax import lax
from jax.experimental import pallas as pl
from jax.experimental.pallas import tpu as pltpu

IN1, OUT1, OUT2 = 3, 3, 4     # fc1: 3->3, fc3: 3->4
MAX_TS = 1024                 # max sublanes per grid step (rows/step = MAX_TS*128)
CHUNK = 32                    # sublanes per inner chunk (4 vregs per feature plane)


def net_kernel(w1_ref, b1_ref, w2_ref, b2_ref, x_ref, o_ref):
    # SMEM scalar-prefetch refs: w1_ref (9,), b1_ref (3,), w2_ref (12,), b2_ref (4,)
    #   w1_ref[j*3 + k] == W1[j, k], w2_ref[i*3 + j] == W2[i, j]  (torch (out, in) layout)
    # x_ref: (3, TS, 128) f32 VMEM.  o_ref: (4, TS, 128) f32 VMEM.
    ts = x_ref.shape[1]
    n_chunks = ts // CHUNK

    # Hoist all 28 parameter scalars out of the chunk loop (one SMEM read each).
    w1 = [[w1_ref[j * IN1 + k] for k in range(IN1)] for j in range(OUT1)]
    b1 = [b1_ref[j] for j in range(OUT1)]
    w2 = [[w2_ref[i * OUT1 + j] for j in range(OUT1)] for i in range(OUT2)]
    b2 = [b2_ref[i] for i in range(OUT2)]

    def chunk_body(c, carry):
        s = pl.multiple_of(c * CHUNK, CHUNK)
        # Three dense (CHUNK, 128) input feature planes.
        xs = [x_ref[k, pl.ds(s, CHUNK), :] for k in range(IN1)]

        # fc1 + ReLU: h_j = relu(sum_k W1[j,k] * x_k + b1_j)  — pure VPU FMAs.
        h = []
        for j in range(OUT1):
            v = (w1[j][0] * xs[0] + w1[j][1] * xs[1] + w1[j][2] * xs[2] + b1[j])
            h.append(jnp.maximum(v, 0.0))

        # fc3 + ReLU, stored plane-by-plane (dense, unmasked vst — no concat temp).
        for i in range(OUT2):
            v = (w2[i][0] * h[0] + w2[i][1] * h[1] + w2[i][2] * h[2] + b2[i])
            o_ref[i, pl.ds(s, CHUNK), :] = jnp.maximum(v, 0.0).astype(o_ref.dtype)
        return carry

    lax.fori_loop(0, n_chunks, chunk_body, 0)


def _pick_grid(m_rows):
    """Sublane tile TS (multiple of CHUNK, capped at MAX_TS) and number of grid steps."""
    s_total = pl.cdiv(max(m_rows, 1), 128)          # sublanes needed for all rows
    s_total = CHUNK * pl.cdiv(s_total, CHUNK)       # round up to a chunk multiple
    n_steps = int(pl.cdiv(s_total, MAX_TS))         # as few (maximal) steps as possible
    ts = int(CHUNK * pl.cdiv(s_total, n_steps * CHUNK))
    return ts, n_steps


def net_forward(x, w1, b1, w2, b2):
    """x: arbitrary shape with total elements divisible by 3 (e.g. NCHW). Returns (M, 4)."""
    x2 = x.reshape(-1, IN1).astype(jnp.float32)      # == torch .view(-1, 3)
    M = x2.shape[0]

    ts, n_steps = _pick_grid(M)
    S = n_steps * ts                                 # total sublanes
    M_pad = S * 128

    # Layout plumbing: pad rows, go feature-major, fold rows into (S, 128) so the
    # kernel sees dense (sublane, lane) feature planes.
    xT = jnp.pad(x2, ((0, M_pad - M), (0, 0))).T.reshape(IN1, S, 128)

    # Flattened params for SMEM scalar prefetch (torch Linear: y = x @ W.T + b).
    w1f = jnp.asarray(w1, jnp.float32).reshape(-1)   # (9,)  w1f[j*3+k] = W1[j,k]
    b1f = jnp.asarray(b1, jnp.float32).reshape(-1)   # (3,)
    w2f = jnp.asarray(w2, jnp.float32).reshape(-1)   # (12,) w2f[i*3+j] = W2[i,j]
    b2f = jnp.asarray(b2, jnp.float32).reshape(-1)   # (4,)

    outT = pl.pallas_call(
        net_kernel,
        out_shape=jax.ShapeDtypeStruct((OUT2, S, 128), jnp.float32),
        grid_spec=pltpu.PrefetchScalarGridSpec(
            num_scalar_prefetch=4,
            grid=(n_steps,),
            in_specs=[
                # Full feature dim (3), ts sublanes x 128 lanes per step.
                pl.BlockSpec((IN1, ts, 128),
                             lambda i, w1r, b1r, w2r, b2r: (0, i, 0)),
            ],
            out_specs=pl.BlockSpec((OUT2, ts, 128),
                                   lambda i, w1r, b1r, w2r, b2r: (0, i, 0)),
        ),
        compiler_params=pltpu.CompilerParams(
            dimension_semantics=("parallel",)),
    )(w1f, b1f, w2f, b2f, xT)

    # Back to natural (M, 4) layout; padded rows dropped.
    return outT.reshape(OUT2, M_pad).T[:M]


def init_params(key):
    """Deterministic parameter init (shapes from Net.__init__)."""
    k1, k2, k3, k4 = jax.random.split(key, 4)
    # torch Linear default init: U(-1/sqrt(fan_in), 1/sqrt(fan_in))
    s1 = 1.0 / jnp.sqrt(IN1)
    s2 = 1.0 / jnp.sqrt(OUT1)
    w1 = jax.random.uniform(k1, (OUT1, IN1), jnp.float32, -s1, s1)
    b1 = jax.random.uniform(k2, (OUT1,), jnp.float32, -s1, s1)
    w2 = jax.random.uniform(k3, (OUT2, OUT1), jnp.float32, -s2, s2)
    b2 = jax.random.uniform(k4, (OUT2,), jnp.float32, -s2, s2)
    return w1, b1, w2, b2


if __name__ == "__main__":
    key = jax.random.PRNGKey(0)
    kx, kp = jax.random.split(key)

    # Small NCHW input; total elements = 2*3*16*16 = 1536 -> 512 rows of 3.
    x = jax.random.normal(kx, (2, 3, 16, 16), jnp.float32)
    w1, b1, w2, b2 = init_params(kp)

    out = net_forward(x, w1, b1, w2, b2)
    out = jax.block_until_ready(out)

    # Pure-JAX reference check.
    xr = x.reshape(-1, 3)
    h = jnp.maximum(xr @ w1.T + b1, 0.0)
    ref = jnp.maximum(h @ w2.T + b2, 0.0)
    assert out.shape == (512, 4), out.shape
    assert jnp.allclose(out, ref, atol=1e-5, rtol=1e-5)

    print("KERNEL_OK")
</pallas_src>

<mosaic_0001>
module attributes {stable_mosaic.version = 11 : i64} {
  func.func @net_kernel(%arg0: i32, %arg1: memref<9xf32, #tpu.memory_space<smem>>, %arg2: memref<3xf32, #tpu.memory_space<smem>>, %arg3: memref<12xf32, #tpu.memory_space<smem>>, %arg4: memref<4xf32, #tpu.memory_space<smem>>, %arg5: memref<3x32x128xf32, #tpu.memory_space<vmem>>, %arg6: memref<4x32x128xf32, #tpu.memory_space<vmem>>) attributes {dimension_semantics = [#tpu.dimension_semantics<parallel>], iteration_bounds = array<i64: 1>, scalar_prefetch = 4 : i64, scratch_operands = 0 : i64, tpu.core_type = #tpu.core_type<tc>, window_params = [{transform_indices = @transform_0, window_bounds = array<i64: 3, 32, 128>}, {transform_indices = @transform_1, window_bounds = array<i64: 4, 32, 128>}]} {
    %c0 = arith.constant 0 : index
    %0 = memref.load %arg1[%c0] : memref<9xf32, #tpu.memory_space<smem>>
    %c1 = arith.constant 1 : index
    %1 = memref.load %arg1[%c1] : memref<9xf32, #tpu.memory_space<smem>>
    %c2 = arith.constant 2 : index
    %2 = memref.load %arg1[%c2] : memref<9xf32, #tpu.memory_space<smem>>
    %c3 = arith.constant 3 : index
    %3 = memref.load %arg1[%c3] : memref<9xf32, #tpu.memory_space<smem>>
    %c4 = arith.constant 4 : index
    %4 = memref.load %arg1[%c4] : memref<9xf32, #tpu.memory_space<smem>>
    %c5 = arith.constant 5 : index
    %5 = memref.load %arg1[%c5] : memref<9xf32, #tpu.memory_space<smem>>
    %c6 = arith.constant 6 : index
    %6 = memref.load %arg1[%c6] : memref<9xf32, #tpu.memory_space<smem>>
    %c7 = arith.constant 7 : index
    %7 = memref.load %arg1[%c7] : memref<9xf32, #tpu.memory_space<smem>>
    %c8 = arith.constant 8 : index
    %8 = memref.load %arg1[%c8] : memref<9xf32, #tpu.memory_space<smem>>
    %c0_0 = arith.constant 0 : index
    %9 = memref.load %arg2[%c0_0] : memref<3xf32, #tpu.memory_space<smem>>
    %c1_1 = arith.constant 1 : index
    %10 = memref.load %arg2[%c1_1] : memref<3xf32, #tpu.memory_space<smem>>
    %c2_2 = arith.constant 2 : index
    %11 = memref.load %arg2[%c2_2] : memref<3xf32, #tpu.memory_space<smem>>
    %c0_3 = arith.constant 0 : index
    %12 = memref.load %arg3[%c0_3] : memref<12xf32, #tpu.memory_space<smem>>
    %c1_4 = arith.constant 1 : index
    %13 = memref.load %arg3[%c1_4] : memref<12xf32, #tpu.memory_space<smem>>
    %c2_5 = arith.constant 2 : index
    %14 = memref.load %arg3[%c2_5] : memref<12xf32, #tpu.memory_space<smem>>
    %c3_6 = arith.constant 3 : index
    %15 = memref.load %arg3[%c3_6] : memref<12xf32, #tpu.memory_space<smem>>
    %c4_7 = arith.constant 4 : index
    %16 = memref.load %arg3[%c4_7] : memref<12xf32, #tpu.memory_space<smem>>
    %c5_8 = arith.constant 5 : index
    %17 = memref.load %arg3[%c5_8] : memref<12xf32, #tpu.memory_space<smem>>
    %c6_9 = arith.constant 6 : index
    %18 = memref.load %arg3[%c6_9] : memref<12xf32, #tpu.memory_space<smem>>
    %c7_10 = arith.constant 7 : index
    %19 = memref.load %arg3[%c7_10] : memref<12xf32, #tpu.memory_space<smem>>
    %c8_11 = arith.constant 8 : index
    %20 = memref.load %arg3[%c8_11] : memref<12xf32, #tpu.memory_space<smem>>
    %c9 = arith.constant 9 : index
    %21 = memref.load %arg3[%c9] : memref<12xf32, #tpu.memory_space<smem>>
    %c10 = arith.constant 10 : index
    %22 = memref.load %arg3[%c10] : memref<12xf32, #tpu.memory_space<smem>>
    %c11 = arith.constant 11 : index
    %23 = memref.load %arg3[%c11] : memref<12xf32, #tpu.memory_space<smem>>
    %c0_12 = arith.constant 0 : index
    %24 = memref.load %arg4[%c0_12] : memref<4xf32, #tpu.memory_space<smem>>
    %c1_13 = arith.constant 1 : index
    %25 = memref.load %arg4[%c1_13] : memref<4xf32, #tpu.memory_space<smem>>
    %c2_14 = arith.constant 2 : index
    %26 = memref.load %arg4[%c2_14] : memref<4xf32, #tpu.memory_space<smem>>
    %c3_15 = arith.constant 3 : index
    %27 = memref.load %arg4[%c3_15] : memref<4xf32, #tpu.memory_space<smem>>
    %c0_i32 = arith.constant 0 : i32
    %c32_i32 = arith.constant 32 : i32
    %28 = arith.muli %c0_i32, %c32_i32 : i32
    %29 = tpu.assume_multiple %28, 32 : i32
    %c0_16 = arith.constant 0 : index
    %30 = arith.index_cast %29 : i32 to index
    %c0_17 = arith.constant 0 : index
    %31 = vector.load %arg5[%c0_16, %30, %c0_17] : memref<3x32x128xf32, #tpu.memory_space<vmem>>, vector<1x32x128xf32>
    %32 = vector.shape_cast %31 : vector<1x32x128xf32> to vector<32x128xf32>
    %c1_18 = arith.constant 1 : index
    %33 = arith.index_cast %29 : i32 to index
    %c0_19 = arith.constant 0 : index
    %34 = vector.load %arg5[%c1_18, %33, %c0_19] : memref<3x32x128xf32, #tpu.memory_space<vmem>>, vector<1x32x128xf32>
    %35 = vector.shape_cast %34 : vector<1x32x128xf32> to vector<32x128xf32>
    %c2_20 = arith.constant 2 : index
    %36 = arith.index_cast %29 : i32 to index
    %c0_21 = arith.constant 0 : index
    %37 = vector.load %arg5[%c2_20, %36, %c0_21] : memref<3x32x128xf32, #tpu.memory_space<vmem>>, vector<1x32x128xf32>
    %38 = vector.shape_cast %37 : vector<1x32x128xf32> to vector<32x128xf32>
    %39 = vector.broadcast %0 : f32 to vector<32x128xf32>
    %40 = arith.mulf %39, %32 : vector<32x128xf32>
    %41 = vector.broadcast %1 : f32 to vector<32x128xf32>
    %42 = arith.mulf %41, %35 : vector<32x128xf32>
    %43 = arith.addf %40, %42 : vector<32x128xf32>
    %44 = vector.broadcast %2 : f32 to vector<32x128xf32>
    %45 = arith.mulf %44, %38 : vector<32x128xf32>
    %46 = arith.addf %43, %45 : vector<32x128xf32>
    %47 = vector.broadcast %9 : f32 to vector<32x128xf32>
    %48 = arith.addf %46, %47 : vector<32x128xf32>
    %cst = arith.constant 0.000000e+00 : f32
    %49 = vector.broadcast %cst : f32 to vector<32x128xf32>
    %50 = arith.maximumf %48, %49 : vector<32x128xf32>
    %51 = vector.broadcast %3 : f32 to vector<32x128xf32>
    %52 = arith.mulf %51, %32 : vector<32x128xf32>
    %53 = vector.broadcast %4 : f32 to vector<32x128xf32>
    %54 = arith.mulf %53, %35 : vector<32x128xf32>
    %55 = arith.addf %52, %54 : vector<32x128xf32>
    %56 = vector.broadcast %5 : f32 to vector<32x128xf32>
    %57 = arith.mulf %56, %38 : vector<32x128xf32>
    %58 = arith.addf %55, %57 : vector<32x128xf32>
    %59 = vector.broadcast %10 : f32 to vector<32x128xf32>
    %60 = arith.addf %58, %59 : vector<32x128xf32>
    %cst_22 = arith.constant 0.000000e+00 : f32
    %61 = vector.broadcast %cst_22 : f32 to vector<32x128xf32>
    %62 = arith.maximumf %60, %61 : vector<32x128xf32>
    %63 = vector.broadcast %6 : f32 to vector<32x128xf32>
    %64 = arith.mulf %63, %32 : vector<32x128xf32>
    %65 = vector.broadcast %7 : f32 to vector<32x128xf32>
    %66 = arith.mulf %65, %35 : vector<32x128xf32>
    %67 = arith.addf %64, %66 : vector<32x128xf32>
    %68 = vector.broadcast %8 : f32 to vector<32x128xf32>
    %69 = arith.mulf %68, %38 : vector<32x128xf32>
    %70 = arith.addf %67, %69 : vector<32x128xf32>
    %71 = vector.broadcast %11 : f32 to vector<32x128xf32>
    %72 = arith.addf %70, %71 : vector<32x128xf32>
    %cst_23 = arith.constant 0.000000e+00 : f32
    %73 = vector.broadcast %cst_23 : f32 to vector<32x128xf32>
    %74 = arith.maximumf %72, %73 : vector<32x128xf32>
    %75 = vector.broadcast %12 : f32 to vector<32x128xf32>
    %76 = arith.mulf %75, %50 : vector<32x128xf32>
    %77 = vector.broadcast %13 : f32 to vector<32x128xf32>
    %78 = arith.mulf %77, %62 : vector<32x128xf32>
    %79 = arith.addf %76, %78 : vector<32x128xf32>
    %80 = vector.broadcast %14 : f32 to vector<32x128xf32>
    %81 = arith.mulf %80, %74 : vector<32x128xf32>
    %82 = arith.addf %79, %81 : vector<32x128xf32>
    %83 = vector.broadcast %24 : f32 to vector<32x128xf32>
    %84 = arith.addf %82, %83 : vector<32x128xf32>
    %cst_24 = arith.constant 0.000000e+00 : f32
    %85 = vector.broadcast %cst_24 : f32 to vector<32x128xf32>
    %86 = arith.maximumf %84, %85 : vector<32x128xf32>
    %c0_25 = arith.constant 0 : index
    %87 = arith.index_cast %29 : i32 to index
    %c0_26 = arith.constant 0 : index
    %88 = vector.load %arg6[%c0_25, %87, %c0_26] : memref<4x32x128xf32, #tpu.memory_space<vmem>>, vector<1x32x128xf32>
    %89 = vector.shape_cast %88 : vector<1x32x128xf32> to vector<32x128xf32>
    %90 = vector.shape_cast %86 : vector<32x128xf32> to vector<1x32x128xf32>
    tpu.vector_store %arg6[%c0_25, %87, %c0_26], %90 {strides = array<i32>} : memref<4x32x128xf32, #tpu.memory_space<vmem>>, vector<1x32x128xf32>,
    %91 = vector.broadcast %15 : f32 to vector<32x128xf32>
    %92 = arith.mulf %91, %50 : vector<32x128xf32>
    %93 = vector.broadcast %16 : f32 to vector<32x128xf32>
    %94 = arith.mulf %93, %62 : vector<32x128xf32>
    %95 = arith.addf %92, %94 : vector<32x128xf32>
    %96 = vector.broadcast %17 : f32 to vector<32x128xf32>
    %97 = arith.mulf %96, %74 : vector<32x128xf32>
    %98 = arith.addf %95, %97 : vector<32x128xf32>
    %99 = vector.broadcast %25 : f32 to vector<32x128xf32>
    %100 = arith.addf %98, %99 : vector<32x128xf32>
    %cst_27 = arith.constant 0.000000e+00 : f32
    %101 = vector.broadcast %cst_27 : f32 to vector<32x128xf32>
    %102 = arith.maximumf %100, %101 : vector<32x128xf32>
    %c1_28 = arith.constant 1 : index
    %103 = arith.index_cast %29 : i32 to index
    %c0_29 = arith.constant 0 : index
    %104 = vector.load %arg6[%c1_28, %103, %c0_29] : memref<4x32x128xf32, #tpu.memory_space<vmem>>, vector<1x32x128xf32>
    %105 = vector.shape_cast %104 : vector<1x32x128xf32> to vector<32x128xf32>
    %106 = vector.shape_cast %102 : vector<32x128xf32> to vector<1x32x128xf32>
    tpu.vector_store %arg6[%c1_28, %103, %c0_29], %106 {strides = array<i32>} : memref<4x32x128xf32, #tpu.memory_space<vmem>>, vector<1x32x128xf32>,
    %107 = vector.broadcast %18 : f32 to vector<32x128xf32>
    %108 = arith.mulf %107, %50 : vector<32x128xf32>
    %109 = vector.broadcast %19 : f32 to vector<32x128xf32>
    %110 = arith.mulf %109, %62 : vector<32x128xf32>
    %111 = arith.addf %108, %110 : vector<32x128xf32>
    %112 = vector.broadcast %20 : f32 to vector<32x128xf32>
    %113 = arith.mulf %112, %74 : vector<32x128xf32>
    %114 = arith.addf %111, %113 : vector<32x128xf32>
    %115 = vector.broadcast %26 : f32 to vector<32x128xf32>
    %116 = arith.addf %114, %115 : vector<32x128xf32>
    %cst_30 = arith.constant 0.000000e+00 : f32
    %117 = vector.broadcast %cst_30 : f32 to vector<32x128xf32>
    %118 = arith.maximumf %116, %117 : vector<32x128xf32>
    %c2_31 = arith.constant 2 : index
    %119 = arith.index_cast %29 : i32 to index
    %c0_32 = arith.constant 0 : index
    %120 = vector.load %arg6[%c2_31, %119, %c0_32] : memref<4x32x128xf32, #tpu.memory_space<vmem>>, vector<1x32x128xf32>
    %121 = vector.shape_cast %120 : vector<1x32x128xf32> to vector<32x128xf32>
    %122 = vector.shape_cast %118 : vector<32x128xf32> to vector<1x32x128xf32>
    tpu.vector_store %arg6[%c2_31, %119, %c0_32], %122 {strides = array<i32>} : memref<4x32x128xf32, #tpu.memory_space<vmem>>, vector<1x32x128xf32>,
    %123 = vector.broadcast %21 : f32 to vector<32x128xf32>
    %124 = arith.mulf %123, %50 : vector<32x128xf32>
    %125 = vector.broadcast %22 : f32 to vector<32x128xf32>
    %126 = arith.mulf %125, %62 : vector<32x128xf32>
    %127 = arith.addf %124, %126 : vector<32x128xf32>
    %128 = vector.broadcast %23 : f32 to vector<32x128xf32>
    %129 = arith.mulf %128, %74 : vector<32x128xf32>
    %130 = arith.addf %127, %129 : vector<32x128xf32>
    %131 = vector.broadcast %27 : f32 to vector<32x128xf32>
    %132 = arith.addf %130, %131 : vector<32x128xf32>
    %cst_33 = arith.constant 0.000000e+00 : f32
    %133 = vector.broadcast %cst_33 : f32 to vector<32x128xf32>
    %134 = arith.maximumf %132, %133 : vector<32x128xf32>
    %c3_34 = arith.constant 3 : index
    %135 = arith.index_cast %29 : i32 to index
    %c0_35 = arith.constant 0 : index
    %136 = vector.load %arg6[%c3_34, %135, %c0_35] : memref<4x32x128xf32, #tpu.memory_space<vmem>>, vector<1x32x128xf32>
    %137 = vector.shape_cast %136 : vector<1x32x128xf32> to vector<32x128xf32>
    %138 = vector.shape_cast %134 : vector<32x128xf32> to vector<1x32x128xf32>
    tpu.vector_store %arg6[%c3_34, %135, %c0_35], %138 {strides = array<i32>} : memref<4x32x128xf32, #tpu.memory_space<vmem>>, vector<1x32x128xf32>,
    %c1_i32 = arith.constant 1 : i32
    return
  }
  func.func @transform_0(%arg0: i32, %arg1: memref<9xf32, #tpu.memory_space<smem>>, %arg2: memref<3xf32, #tpu.memory_space<smem>>, %arg3: memref<12xf32, #tpu.memory_space<smem>>, %arg4: memref<4xf32, #tpu.memory_space<smem>>) -> (i32, i32, i32) {
    %c0_i32 = arith.constant 0 : i32
    %c0_i32_0 = arith.constant 0 : i32
    %c0_i32_1 = arith.constant 0 : i32
    return %c0_i32, %arg0, %c0_i32_0 : i32, i32, i32
  }
  func.func @transform_1(%arg0: i32, %arg1: memref<9xf32, #tpu.memory_space<smem>>, %arg2: memref<3xf32, #tpu.memory_space<smem>>, %arg3: memref<12xf32, #tpu.memory_space<smem>>, %arg4: memref<4xf32, #tpu.memory_space<smem>>) -> (i32, i32, i32) {
    %c0_i32 = arith.constant 0 : i32
    %c0_i32_0 = arith.constant 0 : i32
    %c0_i32_1 = arith.constant 0 : i32
    return %c0_i32, %arg0, %c0_i32_0 : i32, i32, i32
  }
}

</mosaic_0001>

<llo_original>
// kernel: tpu_custom_call.1
$region0: #{tpu_custom_call.1}
  #allocation0 [shape = 'u32[]', space=smem, size = 0x4, offset = 0x4, fixed_abs, tag = 'smem constant byte address 0x4 - core index']
  #allocation1 [shape = 'u32[72,128]{1,0:T(1,128)}', space=vmem, size = 0x9000, scoped, tag = 'internal scratch']
  #allocation2 [shape = 's32[1]{0}', space=sflag, size = 0x4, scoped, tag = 'scoped memory for tpu_custom_call.1']
  #allocation3 [shape = 'u8[512]{0}', space=smem, size = 0x200, scoped, tag = 'prefetched SMEM operand 0']
  #allocation4 [shape = 'u8[512]{0}', space=smem, size = 0x200, scoped, tag = 'prefetched SMEM operand 1']
  #allocation5 [shape = 'u8[512]{0}', space=smem, size = 0x200, scoped, tag = 'prefetched SMEM operand 2']
  #allocation6 [shape = 'u8[512]{0}', space=smem, size = 0x200, scoped, tag = 'prefetched SMEM operand 3']
  %s0 = inlined_call_operand.hbm [shape: f32[9], index: 0, kind: input, shape index: {}]
  %s1 = inlined_call_operand.hbm [shape: f32[3], index: 1, kind: input, shape index: {}]
  %s2 = inlined_call_operand.vmem [shape: f32[12], index: 2, kind: input, shape index: {}]
  %s3 = inlined_call_operand.vmem [shape: f32[4], index: 3, kind: input, shape index: {}]
  %s4 = inlined_call_operand.hbm [shape: f32[3,32,128], index: 4, kind: input, shape index: {}]
  %s5 = inlined_call_operand.hbm [shape: f32[4,32,128], index: 5, kind: output, shape index: {}]
  %s6 = sld [smem:[#allocation0]]
  $region18: #{tpu_custom_call.1} parent=0
    _
  %s8 = ssub.s32 1, %s6
  %s9 = scalar_select 0, %s8, %s6
  %s11 = sshll.u32 %s0, 4
  %s12 = int_to_ptr.hbm [resolvable:$true] %s11
  %14 = dma.hbm_to_smem %s12, 16, [#allocation3], [#allocation2]
  %s16 = sshll.u32 %s1, 4
  %s17 = int_to_ptr.hbm [resolvable:$true] %s16
  %19 = dma.hbm_to_smem %s17, 16, [#allocation4], [#allocation2]
  %s21 = sshll.u32 %s2, 4
  %s22 = int_to_ptr.vmem [resolvable:$true] %s21
  %24 = dma.vmem_to_smem %s22, 16, [#allocation5], [#allocation2]
  %s26 = sshll.u32 %s3, 4
  %s27 = int_to_ptr.vmem [resolvable:$true] %s26
  %29 = dma.vmem_to_smem %s27, 16, [#allocation6], [#allocation2]
  %31 = dma.done [#allocation2], 64
  %32 = sfence
  $region1: #{tpu_custom_call.1} parent=0
    #allocation7 [shape = 'u8[49152]{0}', space=vmem, size = 0xc000, scoped, tag = 'input window, operand 4, single buffered']
    #allocation8 [shape = 's32[1]{0}', space=sflag, size = 0x4, scoped, tag = 'scoped memory for tpu_custom_call.1']
    #allocation9 [shape = 's32[1]{0}', space=sflag, size = 0x4, scoped, tag = 'scoped memory for tpu_custom_call.1']
    #allocation10 [shape = 'u8[65536]{0}', space=vmem, size = 0x10000, scoped, tag = 'output window, operand 0, single buffered']
    %33 = vsyncpa [#allocation8], 0
    %34 = vsyncpa [#allocation9], 0
    // Predicated region
    $region2: #{tpu_custom_call.1} parent=1 // pred_check
      _
    $region3: #{tpu_custom_call.1} parent=1 // pred_check_branch
      %36 = sbr.rel (0) target = $region5
    $region4: #{tpu_custom_call.1} parent=1 // pred_region
      %38 = vsyncadd [#allocation8], 0
      %s39 = sshll.u32 %s4, 4
      %s40 = int_to_ptr.hbm [resolvable:$true] %s39
      %s41 = sshll.u32 [#allocation7], 4
      %s42 = int_to_ptr.vmem [resolvable:$true] %s41
      %47 = dma.hbm_to_vmem [thread:$0]  %s40, 1536, %s42, [#allocation8], 128, 128, 8
    $region5: #{tpu_custom_call.1} parent=1 // pred_fallthru
      _
    // Predicated region
    $region6: #{tpu_custom_call.1} parent=1 // pred_check
      _
    $region7: #{tpu_custom_call.1} parent=1 // pred_check_branch
      %49 = sbr.rel (0) target = $region9
    $region8: #{tpu_custom_call.1} parent=1 // pred_region
      %51 = dma.done [#allocation8], 1536
    $region9: #{tpu_custom_call.1} parent=1 // pred_fallthru
      _
    %s52 = sld [smem:[#allocation3]]
    %s53 = sld [smem:[#allocation3 + $0x1]]
    %s54 = sld [smem:[#allocation3 + $0x2]]
    %s55 = sld [smem:[#allocation3 + $0x3]]
    %s56 = sld [smem:[#allocation3 + $0x4]]
    %s57 = sld [smem:[#allocation3 + $0x5]]
    %s58 = sld [smem:[#allocation3 + $0x6]]
    %s59 = sld [smem:[#allocation3 + $0x7]]
    %s60 = sld [smem:[#allocation3 + $0x8]]
    %s61 = sld [smem:[#allocation4]]
    %s62 = sld [smem:[#allocation4 + $0x1]]
    %s63 = sld [smem:[#allocation4 + $0x2]]
    %s64 = sld [smem:[#allocation5]]
    %s65 = sld [smem:[#allocation5 + $0x1]]
    %s66 = sld [smem:[#allocation5 + $0x2]]
    %s67 = sld [smem:[#allocation5 + $0x3]]
    %s68 = sld [smem:[#allocation5 + $0x4]]
    %s69 = sld [smem:[#allocation5 + $0x5]]
    %s70 = sld [smem:[#allocation5 + $0x6]]
    %s71 = sld [smem:[#allocation5 + $0x7]]
    %s72 = sld [smem:[#allocation5 + $0x8]]
    %s73 = sld [smem:[#allocation5 + $0x9]]
    %s74 = sld [smem:[#allocation5 + $0xa]]
    %s75 = sld [smem:[#allocation5 + $0xb]]
    %s76 = sld [smem:[#allocation6]]
    %s77 = sld [smem:[#allocation6 + $0x1]]
    %s78 = sld [smem:[#allocation6 + $0x2]]
    %s79 = sld [smem:[#allocation6 + $0x3]]
    %v80 = vld [vmem:[#allocation7] sm:$0xff]
    %v81 = vld [vmem:[#allocation7 + $0x8] sm:$0xff]
    %v82 = vld [vmem:[#allocation7 + $0x10] sm:$0xff]
    %v83 = vld [vmem:[#allocation7 + $0x18] sm:$0xff]
    %s84 = sadd.s32 0, 32
    %s85 = scalar_lea.vmem [#allocation7], %s84
    %v86 = vld [vmem:[%s85] sm:$0xff]
    %v87 = vld [vmem:[%s85 + $0x8] sm:$0xff]
    %v88 = vld [vmem:[%s85 + $0x10] sm:$0xff]
    %v89 = vld [vmem:[%s85 + $0x18] sm:$0xff]
    %s90 = sadd.s32 0, 64
    %s91 = scalar_lea.vmem [#allocation7], %s90
    %v92 = vld [vmem:[%s91] sm:$0xff]
    %v93 = vld [vmem:[%s91 + $0x8] sm:$0xff]
    %v94 = vld [vmem:[%s91 + $0x10] sm:$0xff]
    %v95 = vld [vmem:[%s91 + $0x18] sm:$0xff]
    %v96 = vstv %s52
    %v97 = vmul.f32 %v96, %v80
    %v98 = vmul.f32 %v96, %v81
    %v99 = vmul.f32 %v96, %v82
    %v100 = vmul.f32 %v96, %v83
    %v101 = vstv %s53
    %v102 = vmul.f32 %v101, %v86
    %v103 = vmul.f32 %v101, %v87
    %v104 = vmul.f32 %v101, %v88
    %v105 = vmul.f32 %v101, %v89
    %v106 = vadd.f32 %v97, %v102
    %v107 = vadd.f32 %v98, %v103
    %v108 = vadd.f32 %v99, %v104
    %v109 = vadd.f32 %v100, %v105
    %v110 = vstv %s54
    %v111 = vmul.f32 %v110, %v92
    %v112 = vmul.f32 %v110, %v93
    %v113 = vmul.f32 %v110, %v94
    %v114 = vmul.f32 %v110, %v95
    %v115 = vadd.f32 %v106, %v111
    %v116 = vadd.f32 %v107, %v112
    %v117 = vadd.f32 %v108, %v113
    %v118 = vadd.f32 %v109, %v114
    %v119 = vstv %s61
    %v120 = vadd.f32 %v115, %v119
    %v121 = vadd.f32 %v116, %v119
    %v122 = vadd.f32 %v117, %v119
    %v123 = vadd.f32 %v118, %v119
    %v124 = vmax.f32 %v120, 0.0
    %v125 = vmax.f32 %v121, 0.0
    %v126 = vmax.f32 %v122, 0.0
    %v127 = vmax.f32 %v123, 0.0
    %v128 = vstv %s55
    %v129 = vmul.f32 %v128, %v80
    %v130 = vmul.f32 %v128, %v81
    %v131 = vmul.f32 %v128, %v82
    %v132 = vmul.f32 %v128, %v83
    %v133 = vstv %s56
    %v134 = vmul.f32 %v133, %v86
    %v135 = vmul.f32 %v133, %v87
    %v136 = vmul.f32 %v133, %v88
    %v137 = vmul.f32 %v133, %v89
    %v138 = vadd.f32 %v129, %v134
    %v139 = vadd.f32 %v130, %v135
    %v140 = vadd.f32 %v131, %v136
    %v141 = vadd.f32 %v132, %v137
    %v142 = vstv %s57
    %v143 = vmul.f32 %v142, %v92
    %v144 = vmul.f32 %v142, %v93
    %v145 = vmul.f32 %v142, %v94
    %v146 = vmul.f32 %v142, %v95
    %v147 = vadd.f32 %v138, %v143
    %v148 = vadd.f32 %v139, %v144
    %v149 = vadd.f32 %v140, %v145
    %v150 = vadd.f32 %v141, %v146
    %v151 = vstv %s62
    %v152 = vadd.f32 %v147, %v151
    %v153 = vadd.f32 %v148, %v151
    %v154 = vadd.f32 %v149, %v151
    %v155 = vadd.f32 %v150, %v151
    %v156 = vmax.f32 %v152, 0.0
    %v157 = vmax.f32 %v153, 0.0
    %v158 = vmax.f32 %v154, 0.0
    %v159 = vmax.f32 %v155, 0.0
    %v160 = vstv %s58
    %v161 = vmul.f32 %v160, %v80
    %v162 = vmul.f32 %v160, %v81
    %v163 = vmul.f32 %v160, %v82
    %v164 = vmul.f32 %v160, %v83
    %v165 = vstv %s59
    %v166 = vmul.f32 %v165, %v86
    %v167 = vmul.f32 %v165, %v87
    %v168 = vmul.f32 %v165, %v88
    %v169 = vmul.f32 %v165, %v89
    %v170 = vadd.f32 %v161, %v166
    %v171 = vadd.f32 %v162, %v167
    %v172 = vadd.f32 %v163, %v168
    %v173 = vadd.f32 %v164, %v169
    %v174 = vstv %s60
    %v175 = vmul.f32 %v174, %v92
    %v176 = vmul.f32 %v174, %v93
    %v177 = vmul.f32 %v174, %v94
    %v178 = vmul.f32 %v174, %v95
    %v179 = vadd.f32 %v170, %v175
    %v180 = vadd.f32 %v171, %v176
    %v181 = vadd.f32 %v172, %v177
    %v182 = vadd.f32 %v173, %v178
    %v183 = vstv %s63
    %v184 = vadd.f32 %v179, %v183
    %v185 = vadd.f32 %v180, %v183
    %v186 = vadd.f32 %v181, %v183
    %v187 = vadd.f32 %v182, %v183
    %v188 = vmax.f32 %v184, 0.0
    %v189 = vmax.f32 %v185, 0.0
    %v190 = vmax.f32 %v186, 0.0
    %v191 = vmax.f32 %v187, 0.0
    %v192 = vstv %s64
    %v193 = vmul.f32 %v192, %v124
    %v194 = vmul.f32 %v192, %v125
    %v195 = vmul.f32 %v192, %v126
    %v196 = vmul.f32 %v192, %v127
    %v197 = vstv %s65
    %v198 = vmul.f32 %v197, %v156
    %v199 = vmul.f32 %v197, %v157
    %v200 = vmul.f32 %v197, %v158
    %v201 = vmul.f32 %v197, %v159
    %v202 = vadd.f32 %v193, %v198
    %v203 = vadd.f32 %v194, %v199
    %v204 = vadd.f32 %v195, %v200
    %v205 = vadd.f32 %v196, %v201
    %v206 = vstv %s66
    %v207 = vmul.f32 %v206, %v188
    %v208 = vmul.f32 %v206, %v189
    %v209 = vmul.f32 %v206, %v190
    %v210 = vmul.f32 %v206, %v191
    %v211 = vadd.f32 %v202, %v207
    %v212 = vadd.f32 %v203, %v208
    %v213 = vadd.f32 %v204, %v209
    %v214 = vadd.f32 %v205, %v210
    %v215 = vstv %s76
    %v216 = vadd.f32 %v211, %v215
    %v217 = vadd.f32 %v212, %v215
    %v218 = vadd.f32 %v213, %v215
    %v219 = vadd.f32 %v214, %v215
    %v220 = vmax.f32 %v216, 0.0
    %v221 = vmax.f32 %v217, 0.0
    %v222 = vmax.f32 %v218, 0.0
    %v223 = vmax.f32 %v219, 0.0
    %224 = vst [vmem:[#allocation10] sm:$0xff] %v220
    %225 = vst [vmem:[#allocation10 + $0x8] sm:$0xff] %v221
    %226 = vst [vmem:[#allocation10 + $0x10] sm:$0xff] %v222
    %227 = vst [vmem:[#allocation10 + $0x18] sm:$0xff] %v223
    %v228 = vstv %s67
    %v229 = vmul.f32 %v228, %v124
    %v230 = vmul.f32 %v228, %v125
    %v231 = vmul.f32 %v228, %v126
    %v232 = vmul.f32 %v228, %v127
    %v233 = vstv %s68
    %v234 = vmul.f32 %v233, %v156
    %v235 = vmul.f32 %v233, %v157
    %v236 = vmul.f32 %v233, %v158
    %v237 = vmul.f32 %v233, %v159
    %v238 = vadd.f32 %v229, %v234
    %v239 = vadd.f32 %v230, %v235
    %v240 = vadd.f32 %v231, %v236
    %v241 = vadd.f32 %v232, %v237
    %v242 = vstv %s69
    %v243 = vmul.f32 %v242, %v188
    %v244 = vmul.f32 %v242, %v189
    %v245 = vmul.f32 %v242, %v190
    %v246 = vmul.f32 %v242, %v191
    %v247 = vadd.f32 %v238, %v243
    %v248 = vadd.f32 %v239, %v244
    %v249 = vadd.f32 %v240, %v245
    %v250 = vadd.f32 %v241, %v246
    %v251 = vstv %s77
    %v252 = vadd.f32 %v247, %v251
    %v253 = vadd.f32 %v248, %v251
    %v254 = vadd.f32 %v249, %v251
    %v255 = vadd.f32 %v250, %v251
    %v256 = vmax.f32 %v252, 0.0
    %v257 = vmax.f32 %v253, 0.0
    %v258 = vmax.f32 %v254, 0.0
    %v259 = vmax.f32 %v255, 0.0
    %s260 = scalar_lea.vmem [#allocation10], %s84
    %261 = vst [vmem:[%s260] sm:$0xff] %v256
    %262 = vst [vmem:[%s260 + $0x8] sm:$0xff] %v257
    %263 = vst [vmem:[%s260 + $0x10] sm:$0xff] %v258
    %264 = vst [vmem:[%s260 + $0x18] sm:$0xff] %v259
    %v265 = vstv %s70
    %v266 = vmul.f32 %v265, %v124
    %v267 = vmul.f32 %v265, %v125
    %v268 = vmul.f32 %v265, %v126
    %v269 = vmul.f32 %v265, %v127
    %v270 = vstv %s71
    %v271 = vmul.f32 %v270, %v156
    %v272 = vmul.f32 %v270, %v157
    %v273 = vmul.f32 %v270, %v158
    %v274 = vmul.f32 %v270, %v159
    %v275 = vadd.f32 %v266, %v271
    %v276 = vadd.f32 %v267, %v272
    %v277 = vadd.f32 %v268, %v273
    %v278 = vadd.f32 %v269, %v274
    %v279 = vstv %s72
    %v280 = vmul.f32 %v279, %v188
    %v281 = vmul.f32 %v279, %v189
    %v282 = vmul.f32 %v279, %v190
    %v283 = vmul.f32 %v279, %v191
    %v284 = vadd.f32 %v275, %v280
    %v285 = vadd.f32 %v276, %v281
    %v286 = vadd.f32 %v277, %v282
    %v287 = vadd.f32 %v278, %v283
    %v288 = vstv %s78
    %v289 = vadd.f32 %v284, %v288
    %v290 = vadd.f32 %v285, %v288
    %v291 = vadd.f32 %v286, %v288
    %v292 = vadd.f32 %v287, %v288
    %v293 = vmax.f32 %v289, 0.0
    %v294 = vmax.f32 %v290, 0.0
    %v295 = vmax.f32 %v291, 0.0
    %v296 = vmax.f32 %v292, 0.0
    %s297 = scalar_lea.vmem [#allocation10], %s90
    %298 = vst [vmem:[%s297] sm:$0xff] %v293
    %299 = vst [vmem:[%s297 + $0x8] sm:$0xff] %v294
    %300 = vst [vmem:[%s297 + $0x10] sm:$0xff] %v295
    %301 = vst [vmem:[%s297 + $0x18] sm:$0xff] %v296
    %v302 = vstv %s73
    %v303 = vmul.f32 %v302, %v124
    %v304 = vmul.f32 %v302, %v125
    %v305 = vmul.f32 %v302, %v126
    %v306 = vmul.f32 %v302, %v127
    %v307 = vstv %s74
    %v308 = vmul.f32 %v307, %v156
    %v309 = vmul.f32 %v307, %v157
    %v310 = vmul.f32 %v307, %v158
    %v311 = vmul.f32 %v307, %v159
    %v312 = vadd.f32 %v303, %v308
    %v313 = vadd.f32 %v304, %v309
    %v314 = vadd.f32 %v305, %v310
    %v315 = vadd.f32 %v306, %v311
    %v316 = vstv %s75
    %v317 = vmul.f32 %v316, %v188
    %v318 = vmul.f32 %v316, %v189
    %v319 = vmul.f32 %v316, %v190
    %v320 = vmul.f32 %v316, %v191
    %v321 = vadd.f32 %v312, %v317
    %v322 = vadd.f32 %v313, %v318
    %v323 = vadd.f32 %v314, %v319
    %v324 = vadd.f32 %v315, %v320
    %v325 = vstv %s79
    %v326 = vadd.f32 %v321, %v325
    %v327 = vadd.f32 %v322, %v325
    %v328 = vadd.f32 %v323, %v325
    %v329 = vadd.f32 %v324, %v325
    %v330 = vmax.f32 %v326, 0.0
    %v331 = vmax.f32 %v327, 0.0
    %v332 = vmax.f32 %v328, 0.0
    %v333 = vmax.f32 %v329, 0.0
    %s334 = sadd.s32 0, 96
    %s335 = scalar_lea.vmem [#allocation10], %s334
    %336 = vst [vmem:[%s335] sm:$0xff] %v330
    %337 = vst [vmem:[%s335 + $0x8] sm:$0xff] %v331
    %338 = vst [vmem:[%s335 + $0x10] sm:$0xff] %v332
    %339 = vst [vmem:[%s335 + $0x18] sm:$0xff] %v333
    // Predicated region
    $region10: #{tpu_custom_call.1} parent=1 // pred_check
      _
    $region11: #{tpu_custom_call.1} parent=1 // pred_check_branch
      %341 = sbr.rel (0) target = $region13
    $region12: #{tpu_custom_call.1} parent=1 // pred_region
      %343 = vsyncadd [#allocation9], 0
      %s344 = sshll.u32 [#allocation10], 4
      %s345 = int_to_ptr.vmem [resolvable:$true] %s344
      %s346 = sshll.u32 %s5, 4
      %s347 = int_to_ptr.hbm [resolvable:$true] %s346
      %352 = dma.vmem_to_hbm [thread:$0]  %s345, 2048, %s347, [#allocation9], 128, 128, 8
    $region13: #{tpu_custom_call.1} parent=1 // pred_fallthru
      _
    // Predicated region
    $region14: #{tpu_custom_call.1} parent=1 // pred_check
      _
    $region15: #{tpu_custom_call.1} parent=1 // pred_check_branch
      %354 = sbr.rel (0) target = $region17
    $region16: #{tpu_custom_call.1} parent=1 // pred_region
      %356 = dma.done [#allocation9], 2048
    $region17: #{tpu_custom_call.1} parent=1 // pred_fallthru
      _
    %357 = vsyncpa [#allocation8], 1
    %358 = vsyncpa [#allocation9], 1

</llo_original>
